<compile_context>
chip_gen: v7x
topology: tpu7x:2x2x1
jax: 0.10.0
libtpu: 0.0.40
codegen_flags: <defaults>
</compile_context>

<pallas_src>
import jax
import jax.numpy as jnp
from jax.experimental import pallas as pl
from jax.experimental.pallas import tpu as pltpu

_SQRT_2_OVER_PI = 0.7978845608
_GELU_COEFF = 0.044715


def _gelu_kernel(x_ref, o_ref):
    # Compute in f32 regardless of the HBM-side dtype; the upcast math is free
    # for this memory-bound op (VPU/EUP slots are idle under the DMA).
    x = x_ref[...].astype(jnp.float32)
    x_sq = x * x
    inner = _SQRT_2_OVER_PI * x * (1.0 + _GELU_COEFF * x_sq)
    o_ref[...] = (0.5 * x * (1.0 + jnp.tanh(inner))).astype(o_ref.dtype)


def _gelu_jnp(x):
    # Plain-JAX tail path for the <128-element ragged remainder.
    xf = x.astype(jnp.float32)
    inner = _SQRT_2_OVER_PI * xf * (1.0 + _GELU_COEFF * xf * xf)
    return (0.5 * xf * (1.0 + jnp.tanh(inner))).astype(x.dtype)


def _sublane_multiple(dtype):
    # Rows per vreg: 8 for 32-bit, 16 for 16-bit, 32 for 8-bit dtypes.
    itemsize = jnp.dtype(dtype).itemsize
    return {4: 8, 2: 16, 1: 32}.get(itemsize, 8)


def _gelu_flat(flat):
    """GELU over a flat vector whose length is a multiple of 128."""
    total = flat.size
    dtype = flat.dtype
    itemsize = jnp.dtype(dtype).itemsize
    sublane = _sublane_multiple(dtype)

    # Lane-dense width: largest multiple of 128 (<= 2048) dividing the size.
    width = 128
    for cand in (2048, 1024, 512, 256, 128):
        if total % cand == 0:
            width = cand
            break
    rows = total // width

    # ~4 MiB blocks for 32-bit dtypes, ~3 MiB for 16-bit (f32 temporaries in
    # the kernel body are 2x the block bytes for sub-32-bit inputs).
    target_block_bytes = 4 * 1024 * 1024 if itemsize >= 4 else 3 * 1024 * 1024
    tile_rows = max(sublane, target_block_bytes // (width * itemsize))
    tile_rows = (tile_rows // sublane) * sublane

    if tile_rows >= rows:
        tile_rows = rows                       # single full-extent block
    else:
        # Megacore balance (v7x = 2 TCs): even number of roughly equal blocks,
        # row counts rounded up to the sublane packing so non-final blocks
        # write unmasked (vst, not vst.msk).
        steps = -(-rows // tile_rows)          # cdiv
        if steps % 2:
            steps += 1
        tile_rows = -(-rows // steps)
        tile_rows = min(rows, -(-tile_rows // sublane) * sublane)

    grid = (pl.cdiv(rows, tile_rows),)
    x2 = flat.reshape(rows, width)

    out = pl.pallas_call(
        _gelu_kernel,
        out_shape=jax.ShapeDtypeStruct((rows, width), dtype),
        grid_spec=pltpu.PrefetchScalarGridSpec(
            num_scalar_prefetch=0,
            grid=grid,
            in_specs=[pl.BlockSpec((tile_rows, width), lambda i: (i, 0))],
            out_specs=pl.BlockSpec((tile_rows, width), lambda i: (i, 0)),
        ),
        compiler_params=pltpu.CompilerParams(
            dimension_semantics=("parallel",),
            # Explicit headroom above the scoped default (16 MiB on v5e,
            # 32 MiB on v6e/v7x); stays well under v7x's 64 MiB physical VMEM.
            vmem_limit_bytes=48 * 1024 * 1024,
        ),
        # TODO(synk): add input_output_aliases={0: 0} when callers can donate x.
    )(x2)
    return out.reshape(-1)


def gelu_pallas(x):
    """Elementwise tanh-GELU matching the PyTorch reference module."""
    orig_shape = x.shape
    n = x.size
    if n == 0:
        return x

    flat = x.reshape(-1)
    rem = n % 128
    if rem == 0:
        return _gelu_flat(flat).reshape(orig_shape)

    # Ragged size: kernel on the multiple-of-128 prefix, tiny jnp tail.
    main = n - rem
    tail_out = _gelu_jnp(flat[main:])
    if main == 0:
        return tail_out.reshape(orig_shape)
    main_out = _gelu_flat(flat[:main])
    return jnp.concatenate([main_out, tail_out]).reshape(orig_shape)


def gelu_ref(x):
    xf = x.astype(jnp.float32)
    y = 0.5 * xf * (1.0 + jnp.tanh(0.7978845608 * (xf + 0.044715 * xf ** 3)))
    return y.astype(x.dtype)


if __name__ == "__main__":
    key = jax.random.PRNGKey(0)

    # [batch, seq, hidden] transformer MLP activation shape (small).
    x = jax.random.normal(key, (2, 8, 32), dtype=jnp.float32)
    y = gelu_pallas(x)
    jax.block_until_ready(y)
    assert y.shape == x.shape and y.dtype == x.dtype
    assert jnp.allclose(y, gelu_ref(x), atol=1e-5, rtol=1e-5)

    # bf16 path: HBM traffic stays bf16, math is done in f32 inside the kernel.
    xb = jax.random.normal(jax.random.PRNGKey(1), (4, 8, 64), dtype=jnp.bfloat16)
    yb = gelu_pallas(xb)
    jax.block_until_ready(yb)
    assert yb.shape == xb.shape and yb.dtype == xb.dtype
    assert jnp.allclose(yb.astype(jnp.float32), gelu_ref(xb).astype(jnp.float32),
                        atol=2e-2, rtol=2e-2)

    # Size < 128 and not a multiple of 128: pure jnp tail path.
    xr = jax.random.normal(jax.random.PRNGKey(2), (3, 7, 5), dtype=jnp.float32)
    yr = gelu_pallas(xr)
    jax.block_until_ready(yr)
    assert yr.shape == xr.shape
    assert jnp.allclose(yr, gelu_ref(xr), atol=1e-5, rtol=1e-5)

    # Ragged size with a non-empty multiple-of-128 prefix (kernel + jnp tail).
    xm = jax.random.normal(jax.random.PRNGKey(3), (1, 1000), dtype=jnp.float32)
    ym = gelu_pallas(xm)
    jax.block_until_ready(ym)
    assert ym.shape == xm.shape
    assert jnp.allclose(ym, gelu_ref(xm), atol=1e-5, rtol=1e-5)

    print("KERNEL_OK")
</pallas_src>

<mosaic_0001>
module attributes {stable_mosaic.version = 11 : i64} {
  func.func @_gelu_kernel(%arg0: i32, %arg1: memref<1x512xf32, #tpu.memory_space<vmem>>, %arg2: memref<1x512xf32, #tpu.memory_space<vmem>>) attributes {dimension_semantics = [#tpu.dimension_semantics<parallel>], iteration_bounds = array<i64: 1>, scalar_prefetch = 0 : i64, scratch_operands = 0 : i64, tpu.core_type = #tpu.core_type<tc>, window_params = [{transform_indices = @transform_0, window_bounds = array<i64: 1, 512>}, {transform_indices = @transform_1, window_bounds = array<i64: 1, 512>}]} {
    %c0 = arith.constant 0 : index
    %c0_0 = arith.constant 0 : index
    %0 = vector.load %arg1[%c0, %c0_0] : memref<1x512xf32, #tpu.memory_space<vmem>>, vector<1x512xf32>
    %1 = arith.mulf %0, %0 : vector<1x512xf32>
    %cst = arith.constant 0.797884583 : f32
    %2 = vector.broadcast %cst : f32 to vector<1x512xf32>
    %3 = arith.mulf %2, %0 : vector<1x512xf32>
    %cst_1 = arith.constant 4.471500e-02 : f32
    %4 = vector.broadcast %cst_1 : f32 to vector<1x512xf32>
    %5 = arith.mulf %4, %1 : vector<1x512xf32>
    %cst_2 = arith.constant 1.000000e+00 : f32
    %6 = vector.broadcast %cst_2 : f32 to vector<1x512xf32>
    %7 = arith.addf %6, %5 : vector<1x512xf32>
    %8 = arith.mulf %3, %7 : vector<1x512xf32>
    %cst_3 = arith.constant 5.000000e-01 : f32
    %9 = vector.broadcast %cst_3 : f32 to vector<1x512xf32>
    %10 = arith.mulf %9, %0 : vector<1x512xf32>
    %11 = math.tanh %8 : vector<1x512xf32>
    %cst_4 = arith.constant 1.000000e+00 : f32
    %12 = vector.broadcast %cst_4 : f32 to vector<1x512xf32>
    %13 = arith.addf %12, %11 : vector<1x512xf32>
    %14 = arith.mulf %10, %13 : vector<1x512xf32>
    %c0_5 = arith.constant 0 : index
    %c0_6 = arith.constant 0 : index
    %15 = vector.load %arg2[%c0_5, %c0_6] : memref<1x512xf32, #tpu.memory_space<vmem>>, vector<1x512xf32>
    tpu.vector_store %arg2[%c0_5, %c0_6], %14 {strides = array<i32>} : memref<1x512xf32, #tpu.memory_space<vmem>>, vector<1x512xf32>,
    return
  }
  func.func @transform_0(%arg0: i32) -> (i32, i32) {
    %c0_i32 = arith.constant 0 : i32
    %c0_i32_0 = arith.constant 0 : i32
    return %arg0, %c0_i32 : i32, i32
  }
  func.func @transform_1(%arg0: i32) -> (i32, i32) {
    %c0_i32 = arith.constant 0 : i32
    %c0_i32_0 = arith.constant 0 : i32
    return %arg0, %c0_i32 : i32, i32
  }
}

</mosaic_0001>

<llo_original>
// kernel: tpu_custom_call.1
$region0: #{tpu_custom_call.1}
  #allocation0 [shape = 'u32[]', space=smem, size = 0x4, offset = 0x4, fixed_abs, tag = 'smem constant byte address 0x4 - core index']
  #allocation1 [shape = 'u32[144,128]{1,0:T(1,128)}', space=vmem, size = 0x12000, scoped, tag = 'internal scratch']
  %s0 = inlined_call_operand.hbm [shape: f32[1,512], index: 0, kind: input, shape index: {}]
  %s1 = inlined_call_operand.hbm [shape: f32[1,512], index: 1, kind: output, shape index: {}]
  %s2 = sld [smem:[#allocation0]]
  $region18: #{tpu_custom_call.1} parent=0
    _
  %s4 = ssub.s32 1, %s2
  %s5 = scalar_select 0, %s4, %s2
  $region1: #{tpu_custom_call.1} parent=0
    #allocation2 [shape = 'u8[2048]{0}', space=vmem, size = 0x800, scoped, tag = 'input window, operand 0, single buffered']
    #allocation3 [shape = 's32[1]{0}', space=sflag, size = 0x4, scoped, tag = 'scoped memory for tpu_custom_call.1']
    #allocation4 [shape = 's32[1]{0}', space=sflag, size = 0x4, scoped, tag = 'scoped memory for tpu_custom_call.1']
    #allocation5 [shape = 'u8[2048]{0}', space=vmem, size = 0x800, scoped, tag = 'output window, operand 0, single buffered']
    %6 = vsyncpa [#allocation3], 0
    %7 = vsyncpa [#allocation4], 0
    // Predicated region
    $region2: #{tpu_custom_call.1} parent=1 // pred_check
      _
    $region3: #{tpu_custom_call.1} parent=1 // pred_check_branch
      %9 = sbr.rel (0) target = $region5
    $region4: #{tpu_custom_call.1} parent=1 // pred_region
      %s11 = ssub.s32 64, 64
      %12 = vsyncadd [#allocation3], %s11
      %s14 = sshll.u32 [#allocation2], 4
      %s15 = int_to_ptr.vmem [resolvable:$true] %s14
      %17 = dma.hbm_to_vmem [thread:$0]  %s0, 64, %s15, [#allocation3]
    $region5: #{tpu_custom_call.1} parent=1 // pred_fallthru
      _
    // Predicated region
    $region6: #{tpu_custom_call.1} parent=1 // pred_check
      _
    $region7: #{tpu_custom_call.1} parent=1 // pred_check_branch
      %19 = sbr.rel (0) target = $region9
    $region8: #{tpu_custom_call.1} parent=1 // pred_region
      %20 = dma.done [#allocation3], 64
    $region9: #{tpu_custom_call.1} parent=1 // pred_fallthru
      _
    %v21 = vld [vmem:[#allocation2] sm:$0xf]
    %v22 = vmul.f32 %v21, %v21
    %v23 = vmul.f32 %v21, 0.7978846
    %v24 = vmul.f32 %v22, 0.044715
    %v25 = vadd.f32 %v24, 1.0
    %v26 = vmul.f32 %v23, %v25
    %v27 = vmul.f32 %v21, 0.5
    %v28 = vtanh.pop %v26
    %v29 = vadd.f32 %v28, 1.0
    %v30 = vmul.f32 %v27, %v29
    %v31 = vlaneseq
    %vm32 = vcmp.ge.s32.totalorder %v31, 0
    %vm33 = vcmp.lt.s32.totalorder %v31, 512
    %vm34 = vmand %vm32, %vm33
    %35 = vst.msk [vmem:[#allocation5] sm:$0xf] %vm34, %v30
    // Predicated region
    $region10: #{tpu_custom_call.1} parent=1 // pred_check
      _
    $region11: #{tpu_custom_call.1} parent=1 // pred_check_branch
      %37 = sbr.rel (0) target = $region13
    $region12: #{tpu_custom_call.1} parent=1 // pred_region
      %s39 = ssub.s32 64, 64
      %40 = vsyncadd [#allocation4], %s39
      %s42 = sshll.u32 [#allocation5], 4
      %s43 = int_to_ptr.vmem [resolvable:$true] %s42
      %45 = dma.vmem_to_hbm [thread:$0]  %s43, 64, %s1, [#allocation4]
    $region13: #{tpu_custom_call.1} parent=1 // pred_fallthru
      _
    // Predicated region
    $region14: #{tpu_custom_call.1} parent=1 // pred_check
      _
    $region15: #{tpu_custom_call.1} parent=1 // pred_check_branch
      %47 = sbr.rel (0) target = $region17
    $region16: #{tpu_custom_call.1} parent=1 // pred_region
      %48 = dma.done [#allocation4], 64
    $region17: #{tpu_custom_call.1} parent=1 // pred_fallthru
      _
    %49 = vsyncpa [#allocation3], 1
    %50 = vsyncpa [#allocation4], 1

</llo_original>
